<compile_context>
chip_gen: v5e
topology: v5e:2x2
jax: 0.10.0
libtpu: 0.0.40
codegen_flags: <defaults>
</compile_context>

<pallas_src>
import numpy as np
import jax
import jax.numpy as jnp
from jax.experimental import pallas as pl
from jax.experimental.pallas import tpu as pltpu

# Module hyperparameters (z_dim / N are free in the source; keep them small).
Z_DIM = 8
N_HID = 32
BATCH = 8

LANES = 128  # TPU lane width -- every weight block is padded lane-dense to this.


def _ru8(n):
    return ((n + 7) // 8) * 8


# Row offsets inside the packed parameter slab (all multiples of 8 = f32 sublane).
_R_W1 = 0                      # rows [0 : ru8(Z_DIM))   W1^T (Z_DIM, 128), lanes [0:N_HID) real
_R_B1 = _R_W1 + _ru8(Z_DIM)    # row  _R_B1              b1   (lanes [0:N_HID) real)
_R_W2 = _R_B1 + 8              # rows [_R_W2 : +128)     W2^T (128, 128), [0:N_HID,0:N_HID) real
_R_B2 = _R_W2 + LANES          # row  _R_B2              b2
_R_W3 = _R_B2 + 8              # row  _R_W3              W3 in ROW form: w3_row[k] = W3[0, k]
_R_B3 = _R_W3 + 8              # row  _R_B3, lane 0      b3
SLAB_ROWS = _R_B3 + 8          # 168 rows -> (168, 128) f32 slab = 84 KiB


def d_net_gauss_kernel(x_ref, slab_ref, o_ref):
    """Fused (linear->relu) x2 -> linear -> sigmoid, lane-dense, compacted output.

    x_ref:    (TB, Z_DIM)        f32 batch tile
    slab_ref: (SLAB_ROWS, 128)   f32 packed params (see offsets above)
    o_ref:    (8, TB)            f32; sublane 0 carries sigmoid(batch rows of tile)
    """
    x = x_ref[...]                                        # (TB, Z_DIM)

    w1 = slab_ref[_R_W1:_R_W1 + Z_DIM, :]                 # (Z_DIM, 128)
    b1 = slab_ref[_R_B1:_R_B1 + 1, :]                     # (1, 128)
    w2 = slab_ref[_R_W2:_R_W2 + LANES, :]                 # (128, 128)
    b2 = slab_ref[_R_B2:_R_B2 + 1, :]                     # (1, 128)
    w3r = slab_ref[_R_W3:_R_W3 + 1, :]                    # (1, 128) row form of W3
    b3 = slab_ref[_R_B3:_R_B3 + 1, 0:1]                   # (1, 1)

    # lin1 + (eval-mode dropout = identity) + relu.  Padded lanes stay exactly 0.
    h1 = jnp.dot(x, w1, preferred_element_type=jnp.float32) + b1
    h1 = jnp.maximum(h1, 0.0)                             # (TB, 128)

    # lin2 + (eval-mode dropout = identity) + relu.
    h2 = jnp.dot(h1, w2, preferred_element_type=jnp.float32) + b2
    h2 = jnp.maximum(h2, 0.0)                             # (TB, 128)

    # lin3 as a trans-B matmul so the result is a lane-dense (1, TB) ROW:
    # logits[0, c] = sum_k W3[0, k] * h2[c, k]
    logits = jax.lax.dot_general(
        w3r, h2,
        dimension_numbers=(((1,), (1,)), ((), ())),
        preferred_element_type=jnp.float32) + b3          # (1, TB)

    out = jax.nn.sigmoid(logits)                          # EUP exp on TB elems only
    o_ref[...] = jnp.broadcast_to(out, o_ref.shape)       # cheap sublane broadcast


def pack_params(params):
    """Pack all six weight/bias tensors into ONE zero-padded (168, 128) f32 slab.

    Host-side (numpy); call ONCE per parameter set and reuse the slab for every
    forward call (the per-call path is then a single pallas_call).
    """
    slab = np.zeros((SLAB_ROWS, LANES), np.float32)
    slab[_R_W1:_R_W1 + Z_DIM, 0:N_HID] = np.asarray(params["w1t"], np.float32)
    slab[_R_B1, 0:N_HID] = np.asarray(params["b1"], np.float32).reshape(N_HID)
    slab[_R_W2:_R_W2 + N_HID, 0:N_HID] = np.asarray(params["w2t"], np.float32)
    slab[_R_B2, 0:N_HID] = np.asarray(params["b2"], np.float32).reshape(N_HID)
    slab[_R_W3, 0:N_HID] = np.asarray(params["w3t"], np.float32).reshape(N_HID)  # W3[0, :]
    slab[_R_B3, 0] = float(np.asarray(params["b3"], np.float32).reshape(()))
    return jnp.asarray(slab)


def _pick_tile(batch):
    """Batch-tile rows: f32-sublane aligned, generation-aware.

    <= 1024 rows: one grid step (whole MLP is ~1-2 us; ~0.35 us/step overhead
    dominates any split).  Larger: at least two "parallel" steps so v7x can use
    both TensorCores, each tile capped at 2048 rows so single-TC v5e/v6e pay
    few step overheads while VMEM stays ~3 MiB (double-buffered).
    """
    b8 = max(_ru8(batch), 8)
    if b8 <= 1024:
        return b8
    half = _ru8(-(-b8 // 2))          # round_up(b8 / 2, 8) -> >= 2 tiles
    return min(half, 2048)


@jax.jit
def d_net_gauss_forward(x, slab):
    """x: (B, Z_DIM) f32, slab: packed (168, 128) params. Returns (B, 1) sigmoid."""
    B = x.shape[0]
    TB = _pick_tile(B)
    num_tiles = pl.cdiv(B, TB)
    B_pad = num_tiles * TB
    if B_pad != B:
        x = jnp.pad(x, ((0, B_pad - B), (0, 0)))

    out = pl.pallas_call(
        d_net_gauss_kernel,
        out_shape=jax.ShapeDtypeStruct((num_tiles * 8, TB), jnp.float32),
        grid_spec=pl.GridSpec(
            grid=(num_tiles,),
            in_specs=[
                pl.BlockSpec((TB, Z_DIM), lambda i: (i, 0)),          # x tile
                pl.BlockSpec((SLAB_ROWS, LANES), lambda i: (0, 0)),   # packed params
            ],
            out_specs=pl.BlockSpec((8, TB), lambda i: (i, 0)),        # compacted out
        ),
        compiler_params=pltpu.CompilerParams(
            dimension_semantics=("parallel",)),
    )(x, slab)

    # Sublane 0 of each 8-row tile carries the real values, lane c = batch row
    # tile*TB + c.  Reassemble and drop padded rows.
    vals = out.reshape(num_tiles, 8, TB)[:, 0, :].reshape(B_pad)
    return vals[:B].reshape(B, 1)


def init_params(key):
    """Deterministic synthetic init mimicking nn.Linear's U(-1/sqrt(fan_in), .)."""
    ks = jax.random.split(key, 6)

    def lin(kw, kb, fan_in, fan_out):
        bound = 1.0 / jnp.sqrt(fan_in)
        # PyTorch stores weight as (out, in); we keep the transposed (in, out)
        # layout so the kernel does x @ W directly.
        w_t = jax.random.uniform(kw, (fan_in, fan_out), jnp.float32,
                                 minval=-bound, maxval=bound)
        b = jax.random.uniform(kb, (1, fan_out), jnp.float32,
                               minval=-bound, maxval=bound)
        return w_t, b

    w1t, b1 = lin(ks[0], ks[1], Z_DIM, N_HID)
    w2t, b2 = lin(ks[2], ks[3], N_HID, N_HID)
    w3t, b3 = lin(ks[4], ks[5], N_HID, 1)
    return {"w1t": w1t, "b1": b1, "w2t": w2t, "b2": b2, "w3t": w3t, "b3": b3}


def reference_forward(x, p):
    """Plain-JAX reference of the eval-mode PyTorch forward."""
    h1 = jnp.maximum(x @ p["w1t"] + p["b1"], 0.0)
    h2 = jnp.maximum(h1 @ p["w2t"] + p["b2"], 0.0)
    return jax.nn.sigmoid(h2 @ p["w3t"] + p["b3"])


if __name__ == "__main__":
    key = jax.random.PRNGKey(0)
    k_x, k_p = jax.random.split(key)

    params = init_params(k_p)
    slab = pack_params(params)   # packed ONCE on host, reused for every call

    # Small batch (single grid step).
    x = jax.random.normal(k_x, (BATCH, Z_DIM), jnp.float32)
    out = jax.block_until_ready(d_net_gauss_forward(x, slab))
    ref = reference_forward(x, params)
    assert out.shape == (BATCH, 1)
    assert jnp.allclose(out, ref, atol=1e-5, rtol=1e-5), (out, ref)

    # Larger, non-aligned batch: exercises padding + the multi-tile "parallel" path.
    x_big = jax.random.normal(k_x, (1050, Z_DIM), jnp.float32)
    out_big = jax.block_until_ready(d_net_gauss_forward(x_big, slab))
    ref_big = reference_forward(x_big, params)
    assert out_big.shape == (1050, 1)
    assert jnp.allclose(out_big, ref_big, atol=1e-5, rtol=1e-5)

    print("KERNEL_OK")
</pallas_src>

<mosaic_0001>
module attributes {stable_mosaic.version = 11 : i64} {
  func.func @d_net_gauss_kernel(%arg0: i32, %arg1: memref<8x8xf32, #tpu.memory_space<vmem>>, %arg2: memref<168x128xf32, #tpu.memory_space<vmem>>, %arg3: memref<8x8xf32, #tpu.memory_space<vmem>>) attributes {dimension_semantics = [#tpu.dimension_semantics<parallel>], iteration_bounds = array<i64: 1>, scalar_prefetch = 0 : i64, scratch_operands = 0 : i64, tpu.core_type = #tpu.core_type<tc>, window_params = [{transform_indices = @transform_0, window_bounds = array<i64: 8, 8>}, {pipeline_mode = #tpu.pipeline_mode<synchronous>, transform_indices = @transform_1, window_bounds = array<i64: 168, 128>}, {transform_indices = @transform_2, window_bounds = array<i64: 8, 8>}]} {
    %c0 = arith.constant 0 : index
    %c0_0 = arith.constant 0 : index
    %0 = vector.load %arg1[%c0, %c0_0] : memref<8x8xf32, #tpu.memory_space<vmem>>, vector<8x8xf32>
    %c0_1 = arith.constant 0 : index
    %c0_2 = arith.constant 0 : index
    %1 = vector.load %arg2[%c0_1, %c0_2] : memref<168x128xf32, #tpu.memory_space<vmem>>, vector<8x128xf32>
    %c8 = arith.constant 8 : index
    %c0_3 = arith.constant 0 : index
    %2 = vector.load %arg2[%c8, %c0_3] : memref<168x128xf32, #tpu.memory_space<vmem>>, vector<1x128xf32>
    %c16 = arith.constant 16 : index
    %c0_4 = arith.constant 0 : index
    %3 = vector.load %arg2[%c16, %c0_4] : memref<168x128xf32, #tpu.memory_space<vmem>>, vector<128x128xf32>
    %c144 = arith.constant 144 : index
    %c0_5 = arith.constant 0 : index
    %4 = vector.load %arg2[%c144, %c0_5] : memref<168x128xf32, #tpu.memory_space<vmem>>, vector<1x128xf32>
    %c152 = arith.constant 152 : index
    %c0_6 = arith.constant 0 : index
    %5 = vector.load %arg2[%c152, %c0_6] : memref<168x128xf32, #tpu.memory_space<vmem>>, vector<1x128xf32>
    %c160 = arith.constant 160 : index
    %c0_7 = arith.constant 0 : index
    %6 = vector.load %arg2[%c160, %c0_7] : memref<168x128xf32, #tpu.memory_space<vmem>>, vector<1x1xf32>
    %cst = arith.constant dense<0.000000e+00> : vector<8x128xf32>
    %7 = tpu.matmul %0, %1, %cst {dimension_numbers = #tpu.dot_dimension_numbers<[1], [0], [0], [1], [0, 0, 1, 1], [], []>} : vector<8x8xf32>, vector<8x128xf32>, vector<8x128xf32> -> vector<8x128xf32>
    %8 = vector.broadcast %2 : vector<1x128xf32> to vector<8x128xf32>
    %9 = arith.addf %7, %8 : vector<8x128xf32>
    %cst_8 = arith.constant 0.000000e+00 : f32
    %10 = vector.broadcast %cst_8 : f32 to vector<8x128xf32>
    %11 = arith.maximumf %9, %10 : vector<8x128xf32>
    %cst_9 = arith.constant dense<0.000000e+00> : vector<8x128xf32>
    %12 = tpu.matmul %11, %3, %cst_9 {dimension_numbers = #tpu.dot_dimension_numbers<[1], [0], [0], [1], [0, 0, 1, 1], [], []>} : vector<8x128xf32>, vector<128x128xf32>, vector<8x128xf32> -> vector<8x128xf32>
    %13 = vector.broadcast %4 : vector<1x128xf32> to vector<8x128xf32>
    %14 = arith.addf %12, %13 : vector<8x128xf32>
    %cst_10 = arith.constant 0.000000e+00 : f32
    %15 = vector.broadcast %cst_10 : f32 to vector<8x128xf32>
    %16 = arith.maximumf %14, %15 : vector<8x128xf32>
    %cst_11 = arith.constant dense<0.000000e+00> : vector<1x8xf32>
    %17 = tpu.matmul %5, %16, %cst_11 {dimension_numbers = #tpu.dot_dimension_numbers<[1], [1], [0], [0], [0, 0, 1, 0], [], []>} : vector<1x128xf32>, vector<8x128xf32>, vector<1x8xf32> -> vector<1x8xf32>
    %18 = vector.broadcast %6 : vector<1x1xf32> to vector<1x8xf32>
    %19 = arith.addf %17, %18 : vector<1x8xf32>
    %20 = arith.negf %19 : vector<1x8xf32>
    %21 = math.exp %20 : vector<1x8xf32>
    %cst_12 = arith.constant 1.000000e+00 : f32
    %22 = vector.broadcast %cst_12 : f32 to vector<1x8xf32>
    %23 = arith.addf %22, %21 : vector<1x8xf32>
    %24 = arith.divf %22, %23 : vector<1x8xf32>
    %25 = vector.shape_cast %24 : vector<1x8xf32> to vector<1x8xf32>
    %26 = vector.broadcast %25 : vector<1x8xf32> to vector<8x8xf32>
    %c0_13 = arith.constant 0 : index
    %c0_14 = arith.constant 0 : index
    %27 = vector.load %arg3[%c0_13, %c0_14] : memref<8x8xf32, #tpu.memory_space<vmem>>, vector<8x8xf32>
    tpu.vector_store %arg3[%c0_13, %c0_14], %26 {strides = array<i32>} : memref<8x8xf32, #tpu.memory_space<vmem>>, vector<8x8xf32>,
    return
  }
  func.func @transform_0(%arg0: i32) -> (i32, i32) {
    %c0_i32 = arith.constant 0 : i32
    %c0_i32_0 = arith.constant 0 : i32
    return %arg0, %c0_i32 : i32, i32
  }
  func.func @transform_1(%arg0: i32) -> (i32, i32) {
    %c0_i32 = arith.constant 0 : i32
    %c0_i32_0 = arith.constant 0 : i32
    %c0_i32_1 = arith.constant 0 : i32
    return %c0_i32, %c0_i32_0 : i32, i32
  }
  func.func @transform_2(%arg0: i32) -> (i32, i32) {
    %c0_i32 = arith.constant 0 : i32
    %c0_i32_0 = arith.constant 0 : i32
    return %arg0, %c0_i32 : i32, i32
  }
}

</mosaic_0001>

<llo_original>
// kernel: d_net_gauss_forward.1
$region0: #{d_net_gauss_forward.1}
  #allocation0 [shape = 'u32[]', space=smem, size = 0x4, offset = 0x4, fixed_abs, tag = 'smem constant byte address 0x4 - core index']
  #allocation1 [shape = 'u32[72,128]{1,0:T(1,128)}', space=vmem, size = 0x9000, scoped, tag = 'internal scratch']
  %s0 = inlined_call_operand.hbm [shape: f32[8,8], index: 0, kind: input, shape index: {}]
  %s1 = inlined_call_operand.hbm [shape: f32[168,128], index: 1, kind: input, shape index: {}]
  %s2 = inlined_call_operand.vmem [shape: f32[8,8], index: 2, kind: output, shape index: {}]
  %s3 = sld [smem:[#allocation0]]
  $region26: #{d_net_gauss_forward.1} parent=0
    _
  %s5 = ssub.s32 1, %s3
  %s6 = scalar_select 0, %s5, %s3
  $region1: #{d_net_gauss_forward.1} parent=0
    #allocation2 [shape = 'u8[4096]{0}', space=vmem, size = 0x1000, scoped, tag = 'input window, operand 0, single buffered']
    #allocation3 [shape = 's32[1]{0}', space=sflag, size = 0x4, scoped, tag = 'scoped memory for d_net_gauss_forward.1']
    #allocation4 [shape = 'u8[86016]{0}', space=vmem, size = 0x15000, scoped, tag = 'input window, operand 1, single buffered']
    #allocation5 [shape = 's32[1]{0}', space=sflag, size = 0x4, scoped, tag = 'scoped memory for d_net_gauss_forward.1']
    %7 = vsyncpa [#allocation3], 0
    %8 = vsyncpa [#allocation5], 0
    // Predicated region
    $region2: #{d_net_gauss_forward.1} parent=1 // pred_check
      _
    $region3: #{d_net_gauss_forward.1} parent=1 // pred_check_branch
      %10 = sbr.rel (0) target = $region5
    $region4: #{d_net_gauss_forward.1} parent=1 // pred_region
      %12 = vsyncadd [#allocation3], 0
      %s14 = sshll.u32 %s0, 4
      %s15 = int_to_ptr.hbm [resolvable:$true] %s14
      %s16 = sshll.u32 [#allocation2], 4
      %s17 = int_to_ptr.vmem [resolvable:$true] %s16
      %19 = dma.hbm_to_vmem [thread:$0]  %s15, 128, %s17, [#allocation3]
    $region5: #{d_net_gauss_forward.1} parent=1 // pred_fallthru
      _
    // Predicated region
    $region6: #{d_net_gauss_forward.1} parent=1 // pred_check
      _
    $region7: #{d_net_gauss_forward.1} parent=1 // pred_check_branch
      %21 = sbr.rel (0) target = $region9
    $region8: #{d_net_gauss_forward.1} parent=1 // pred_region
      %23 = vsyncadd [#allocation5], 0
      %s24 = sshll.u32 %s1, 4
      %s25 = int_to_ptr.hbm [resolvable:$true] %s24
      %s26 = sshll.u32 [#allocation4], 4
      %s27 = int_to_ptr.vmem [resolvable:$true] %s26
      %32 = dma.hbm_to_vmem [thread:$0]  %s25, 2688, %s27, [#allocation5], 128, 128, 8
    $region9: #{d_net_gauss_forward.1} parent=1 // pred_fallthru
      _
    // Predicated region
    $region10: #{d_net_gauss_forward.1} parent=1 // pred_check
      _
    $region11: #{d_net_gauss_forward.1} parent=1 // pred_check_branch
      %34 = sbr.rel (0) target = $region13
    $region12: #{d_net_gauss_forward.1} parent=1 // pred_region
      %36 = dma.done [#allocation3], 128
    $region13: #{d_net_gauss_forward.1} parent=1 // pred_fallthru
      _
    // Predicated region
    $region14: #{d_net_gauss_forward.1} parent=1 // pred_check
      _
    $region15: #{d_net_gauss_forward.1} parent=1 // pred_check_branch
      %38 = sbr.rel (0) target = $region17
    $region16: #{d_net_gauss_forward.1} parent=1 // pred_region
      %40 = dma.done [#allocation5], 2688
    $region17: #{d_net_gauss_forward.1} parent=1 // pred_fallthru
      _
    %v41 = vld [vmem:[#allocation2] sm:$0xff]
    %v42 = vld [vmem:[#allocation4] sm:$0xff]
    %v43 = vld [vmem:[#allocation4 + $0x8] sm:$0x1]
    %v44 = vld [vmem:[#allocation4 + $0x10] sm:$0xff]
    %v45 = vld [vmem:[#allocation4 + $0x18] sm:$0xff]
    %v46 = vld [vmem:[#allocation4 + $0x20] sm:$0xff]
    %v47 = vld [vmem:[#allocation4 + $0x28] sm:$0xff]
    %v48 = vld [vmem:[#allocation4 + $0x30] sm:$0xff]
    %v49 = vld [vmem:[#allocation4 + $0x38] sm:$0xff]
    %v50 = vld [vmem:[#allocation4 + $0x40] sm:$0xff]
    %v51 = vld [vmem:[#allocation4 + $0x48] sm:$0xff]
    %v52 = vld [vmem:[#allocation4 + $0x50] sm:$0xff]
    %v53 = vld [vmem:[#allocation4 + $0x58] sm:$0xff]
    %v54 = vld [vmem:[#allocation4 + $0x60] sm:$0xff]
    %v55 = vld [vmem:[#allocation4 + $0x68] sm:$0xff]
    %v56 = vld [vmem:[#allocation4 + $0x70] sm:$0xff]
    %v57 = vld [vmem:[#allocation4 + $0x78] sm:$0xff]
    %v58 = vld [vmem:[#allocation4 + $0x80] sm:$0xff]
    %v59 = vld [vmem:[#allocation4 + $0x88] sm:$0xff]
    %v60 = vld [vmem:[#allocation4 + $0x90] sm:$0x1]
    %v61 = vld [vmem:[#allocation4 + $0x98] sm:$0x1]
    %v62 = vld [vmem:[#allocation4 + $0xa0] sm:$0x1]
    %v63 = vperm.slane %v43, 0
    %vm64 = vcmask 64512
    %v66 = vsel %vm64, %v41, 0
    %68 = vmatpush.msra.mxu0 0.0
    %69 = vmatpush.msra.mxu0 0.0
    %70 = vmatpush.msra.mxu0 0.0
    %71 = vmatpush.msra.mxu0 0.0
    %72 = vmatpush.msra.mxu0 0.0
    %73 = vmatpush.msra.mxu0 0.0
    %74 = vmatpush.msra.mxu0 0.0
    %75 = vmatpush.msra.mxu0 0.0
    %76 = vmatpush.msra.mxu0 0.0
    %77 = vmatpush.msra.mxu0 0.0
    %78 = vmatpush.msra.mxu0 0.0
    %79 = vmatpush.msra.mxu0 0.0
    %80 = vmatpush.msra.mxu0 0.0
    %81 = vmatpush.msra.mxu0 0.0
    %82 = vmatpush.msra.mxu0 0.0
    %83 = vmatpush.msra.mxu0 %v42
    %84 = vmatmul.f32.gmra.mxu0 %v66
    %v85 = vpop.f32.mrf.mxu0
    %v86 = vadd.f32 %v63, %v85
    %87 = vdwg.mxu0
    %v88 = vmax.f32 %v86, 0.0
    %v89 = vperm.slane %v60, 0
    %90 = vmatpush.msra.mxu0 %v59
    %91 = vmatpush.msra.mxu0 %v58
    %92 = vmatpush.msra.mxu0 %v57
    %93 = vmatpush.msra.mxu0 %v56
    %94 = vmatpush.msra.mxu0 %v55
    %95 = vmatpush.msra.mxu0 %v54
    %96 = vmatpush.msra.mxu0 %v53
    %97 = vmatpush.msra.mxu0 %v52
    %98 = vmatpush.msra.mxu0 %v51
    %99 = vmatpush.msra.mxu0 %v50
    %100 = vmatpush.msra.mxu0 %v49
    %101 = vmatpush.msra.mxu0 %v48
    %102 = vmatpush.msra.mxu0 %v47
    %103 = vmatpush.msra.mxu0 %v46
    %104 = vmatpush.msra.mxu0 %v45
    %105 = vmatpush.msra.mxu0 %v44
    %106 = vmatmul.f32.gmra.mxu0 %v88
    %v107 = vpop.f32.mrf.mxu0
    %v108 = vadd.f32 %v89, %v107
    %109 = vdwg.mxu0
    %v110 = vmax.f32 %v108, 0.0
    %112 = vset.pattern.permute.xlu0 0
    %113 = vperm.xlu0 %112, %v62
    %v114 = vpop.permute.xlu0 %113
    %116 = vmatpush.xpose.msra.mxu0 0.0
    %117 = vmatpush.xpose.msra.mxu0 0.0
    %118 = vmatpush.xpose.msra.mxu0 0.0
    %119 = vmatpush.xpose.msra.mxu0 0.0
    %120 = vmatpush.xpose.msra.mxu0 0.0
    %121 = vmatpush.xpose.msra.mxu0 0.0
    %122 = vmatpush.xpose.msra.mxu0 0.0
    %123 = vmatpush.xpose.msra.mxu0 0.0
    %124 = vmatpush.xpose.msra.mxu0 0.0
    %125 = vmatpush.xpose.msra.mxu0 0.0
    %126 = vmatpush.xpose.msra.mxu0 0.0
    %127 = vmatpush.xpose.msra.mxu0 0.0
    %128 = vmatpush.xpose.msra.mxu0 0.0
    %129 = vmatpush.xpose.msra.mxu0 0.0
    %130 = vmatpush.xpose.msra.mxu0 0.0
    %131 = vmatpush.xpose.msra.mxu0 %v110
    %132 = vmatmul.f32.gmra.mxu0 %v61
    %v133 = vpop.f32.mrf.mxu0
    %v134 = vadd.f32 %v114, %v133
    %135 = vdwg.mxu0
    %v136 = vxor.u32 %v134, 2147483648
    %v137 = vmul.f32 %v136, 1.442695
    %v138 = vpow.pop %v137
    %v139 = vadd.f32 %v138, 1.0
    %v140 = vrcp.pop %v139
    %v141 = vmul.f32 %v139, %v140
    %v142 = vsub.f32 1.0, %v141
    %v143 = vmul.f32 %v140, %v142
    %v144 = vadd.f32 %v140, %v143
    %vm145 = vweird.f32 %v139
    %vm146 = vweird.f32 %v140
    %vm147 = vmor %vm145, %vm146
    %v148 = vsel %vm147, %v140, %v144
    %v149 = vand.u32 2147483647, %v139
    %vm150 = vcmp.eq.f32.partialorder %v149, 8.507059e+37
    %v151 = vand.u32 %v139, 2147483648
    %v152 = vor.u32 1.1754944e-38, %v151
    %v153 = vsel %vm150, %v152, %v148
    %v154 = vmul.f32 1.0, %v153
    %v155 = vperm.slane %v154, 0
    %156 = vst.msk [vmem:[%s2] sm:$0xff] %vm64, %v155
    // Predicated region
    $region18: #{d_net_gauss_forward.1} parent=1 // pred_check
      _
    $region19: #{d_net_gauss_forward.1} parent=1 // pred_check_branch
      %158 = sbr.rel (0) target = $region21
    $region20: #{d_net_gauss_forward.1} parent=1 // pred_region
      _
    $region21: #{d_net_gauss_forward.1} parent=1 // pred_fallthru
      _
    // Predicated region
    $region22: #{d_net_gauss_forward.1} parent=1 // pred_check
      _
    $region23: #{d_net_gauss_forward.1} parent=1 // pred_check_branch
      %160 = sbr.rel (0) target = $region25
    $region24: #{d_net_gauss_forward.1} parent=1 // pred_region
      _
    $region25: #{d_net_gauss_forward.1} parent=1 // pred_fallthru
      _
    %161 = vsyncpa [#allocation3], 1
    %162 = vsyncpa [#allocation5], 1

</llo_original>
